<compile_context>
chip_gen: v5e
topology: v5e:2x2
jax: 0.10.0
libtpu: 0.0.40
codegen_flags: <defaults>
</compile_context>

<pallas_src>
import math

import jax
import jax.numpy as jnp
from jax.experimental import pallas as pl
from jax.experimental.pallas import tpu as pltpu

SHAPE = (4, 8, 8)             # per-sample shape (C, H, W)
SIZE = math.prod(SHAPE)       # 256
BATCH = 2
NUM_HIDDEN = 5                # hidden Linear(size, size) -> Sigmoid blocks
MAX_TM = 512                  # batch-tile cap for the large-batch path


def _sigmoid(z):
    # Exact sigmoid with a single EUP transcendental (tanh); mul/add ride VALU.
    return 0.5 * jnp.tanh(0.5 * z) + 0.5


def disc_kernel(x_ref, w_ref, p_ref, out_ref):
    """One batch tile of the full MLP, entirely in VMEM.

    x_ref  : (TM, SIZE)               bf16 input tile
    w_ref  : (NUM_HIDDEN, SIZE, SIZE) bf16 hidden weights, (in, out) layout
    p_ref  : (NUM_HIDDEN + 2, SIZE)   f32  rows 0..4 = hidden biases,
                                           row 5 = final weight row,
                                           row 6 = final bias (broadcast)
    out_ref: (TM, 1)                  f32  sigmoid scores
    """
    h = x_ref[...]                                           # bf16 (TM, SIZE)
    for i in range(NUM_HIDDEN):
        z = jnp.dot(h.astype(jnp.bfloat16), w_ref[i],
                    preferred_element_type=jnp.float32)
        z = z + p_ref[i:i + 1, :]                            # (1, SIZE) bias
        h = _sigmoid(z)                                      # f32 (TM, SIZE)

    # Final Linear(SIZE, 1): VPU multiply + XLU lane reduction (no 1-column
    # MXU matmul / drain). Kept exact in f32.
    w5 = p_ref[NUM_HIDDEN:NUM_HIDDEN + 1, :]                 # (1, SIZE)
    b5 = p_ref[NUM_HIDDEN + 1:NUM_HIDDEN + 2, 0:1]           # (1, 1)
    score = jnp.sum(h * w5, axis=-1, keepdims=True) + b5     # (TM, 1)
    out_ref[...] = _sigmoid(score).astype(out_ref.dtype)


def init_params(key, size):
    """Deterministic init mimicking nn.Linear defaults (uniform +-1/sqrt(fan_in)).

    Stored PyTorch-style as (out_features, in_features) / (out_features,).
    """
    params = []
    dims = [(size, size)] * NUM_HIDDEN + [(size, 1)]
    for fan_in, fan_out in dims:
        key, k_w, k_b = jax.random.split(key, 3)
        bound = 1.0 / math.sqrt(fan_in)
        w = jax.random.uniform(k_w, (fan_out, fan_in), jnp.float32, -bound, bound)
        b = jax.random.uniform(k_b, (fan_out,), jnp.float32, -bound, bound)
        params.append((w, b))
    return params


def prepare_params(params):
    """One-time (out of the hot path) stacking / transpose / cast of parameters.

    Returns:
      w_stack: (NUM_HIDDEN, SIZE, SIZE) bf16, each layer transposed to (in, out)
      p_stack: (NUM_HIDDEN + 2, SIZE)   f32  [biases; final weight row; final bias]
    """
    w_stack = jnp.stack(
        [jnp.transpose(w).astype(jnp.bfloat16) for w, _ in params[:NUM_HIDDEN]])
    rows = [b.astype(jnp.float32) for _, b in params[:NUM_HIDDEN]]
    w5, b5 = params[NUM_HIDDEN]
    rows.append(w5.reshape(-1).astype(jnp.float32))           # final weight row
    rows.append(jnp.full((SIZE,), b5[0], jnp.float32))        # final bias row
    p_stack = jnp.stack(rows)
    return w_stack, p_stack


@jax.jit
def low_grade_discriminator(x, w_stack, p_stack):
    """x: (N, *per-sample dims with prod == SIZE) -> (N, 1) sigmoid scores."""
    n = x.shape[0]
    assert math.prod(x.shape[1:]) == SIZE, x.shape
    x_flat = x.reshape(n, SIZE).astype(jnp.bfloat16)

    if n <= MAX_TM:
        # Small batch: single full-extent block, no padding, no output slice.
        tm, n_pad = n, n
    else:
        # Large batch: 512-row tiles; n_pad/tm >= 2 so both v7x TCs get work.
        tm = MAX_TM
        n_pad = ((n + tm - 1) // tm) * tm
        x_flat = jnp.pad(x_flat, ((0, n_pad - n), (0, 0)))

    grid = (n_pad // tm,)

    in_specs = [
        pl.BlockSpec((tm, SIZE), lambda i: (i, 0)),                       # x tile
        pl.BlockSpec((NUM_HIDDEN, SIZE, SIZE), lambda i: (0, 0, 0)),      # weights
        pl.BlockSpec((NUM_HIDDEN + 2, SIZE), lambda i: (0, 0)),           # biases+
    ]
    out_specs = pl.BlockSpec((tm, 1), lambda i: (i, 0))

    out = pl.pallas_call(
        disc_kernel,
        out_shape=jax.ShapeDtypeStruct((n_pad, 1), jnp.float32),
        grid=grid,
        in_specs=in_specs,
        out_specs=out_specs,
        compiler_params=pltpu.CompilerParams(
            dimension_semantics=("parallel",)),
    )(x_flat, w_stack, p_stack)

    if n_pad != n:
        out = out[:n]
    return out.astype(x.dtype)


def reference_matched(x, w_stack, p_stack):
    """Pure-JAX reference following the same bf16 compute path as the kernel."""
    h = x.reshape(x.shape[0], -1).astype(jnp.bfloat16)
    for i in range(NUM_HIDDEN):
        z = jnp.dot(h.astype(jnp.bfloat16), w_stack[i],
                    preferred_element_type=jnp.float32) + p_stack[i]
        h = jax.nn.sigmoid(z)
    s = (jnp.sum(h * p_stack[NUM_HIDDEN], axis=-1, keepdims=True)
         + p_stack[NUM_HIDDEN + 1, 0])
    return jax.nn.sigmoid(s)


def reference_f32(x, params):
    """Pure-f32 reference matching the PyTorch module exactly."""
    h = x.reshape(x.shape[0], -1).astype(jnp.float32)
    for w, b in params:
        h = jax.nn.sigmoid(h @ w.T + b)
    return h


if __name__ == "__main__":
    key = jax.random.PRNGKey(0)
    k_x, k_p = jax.random.split(key)

    x = jax.random.normal(k_x, (BATCH, *SHAPE), dtype=jnp.float32)
    params = init_params(k_p, SIZE)
    w_stack, p_stack = prepare_params(params)   # hoisted out of the hot path

    out = low_grade_discriminator(x, w_stack, p_stack)
    out = jax.block_until_ready(out)

    assert out.shape == (BATCH, 1), out.shape

    # Tight check against a reference that follows the same bf16 path.
    ref_m = reference_matched(x, w_stack, p_stack)
    assert jnp.allclose(out, ref_m.astype(out.dtype), atol=1e-2, rtol=1e-2), (
        "mismatch vs bf16-matched reference"
    )
    # Looser check against the exact f32 PyTorch-semantics reference.
    ref_f = reference_f32(x, params)
    assert jnp.allclose(out, ref_f.astype(out.dtype), atol=2e-2, rtol=2e-2), (
        "mismatch vs f32 reference"
    )

    print("KERNEL_OK")
</pallas_src>

<mosaic_0001>
module attributes {stable_mosaic.version = 11 : i64} {
  func.func @disc_kernel(%arg0: i32, %arg1: memref<2x256xbf16, #tpu.memory_space<vmem>>, %arg2: memref<5x256x256xbf16, #tpu.memory_space<vmem>>, %arg3: memref<7x256xf32, #tpu.memory_space<vmem>>, %arg4: memref<2x1xf32, #tpu.memory_space<vmem>>) attributes {dimension_semantics = [#tpu.dimension_semantics<parallel>], iteration_bounds = array<i64: 1>, scalar_prefetch = 0 : i64, scratch_operands = 0 : i64, tpu.core_type = #tpu.core_type<tc>, window_params = [{transform_indices = @transform_0, window_bounds = array<i64: 2, 256>}, {pipeline_mode = #tpu.pipeline_mode<synchronous>, transform_indices = @transform_1, window_bounds = array<i64: 5, 256, 256>}, {pipeline_mode = #tpu.pipeline_mode<synchronous>, transform_indices = @transform_2, window_bounds = array<i64: 7, 256>}, {transform_indices = @transform_3, window_bounds = array<i64: 2, 1>}]} {
    %c0 = arith.constant 0 : index
    %c0_0 = arith.constant 0 : index
    %0 = vector.load %arg1[%c0, %c0_0] : memref<2x256xbf16, #tpu.memory_space<vmem>>, vector<2x256xbf16>
    %c0_1 = arith.constant 0 : index
    %c0_2 = arith.constant 0 : index
    %c0_3 = arith.constant 0 : index
    %1 = vector.load %arg2[%c0_1, %c0_2, %c0_3] : memref<5x256x256xbf16, #tpu.memory_space<vmem>>, vector<1x256x256xbf16>
    %2 = vector.shape_cast %1 : vector<1x256x256xbf16> to vector<256x256xbf16>
    %cst = arith.constant dense<0.000000e+00> : vector<2x256xf32>
    %3 = tpu.matmul %0, %2, %cst {dimension_numbers = #tpu.dot_dimension_numbers<[1], [0], [0], [1], [0, 0, 1, 1], [], []>} : vector<2x256xbf16>, vector<256x256xbf16>, vector<2x256xf32> -> vector<2x256xf32>
    %c0_4 = arith.constant 0 : index
    %c0_5 = arith.constant 0 : index
    %4 = vector.load %arg3[%c0_4, %c0_5] : memref<7x256xf32, #tpu.memory_space<vmem>>, vector<1x256xf32>
    %5 = vector.broadcast %4 : vector<1x256xf32> to vector<2x256xf32>
    %6 = arith.addf %3, %5 : vector<2x256xf32>
    %cst_6 = arith.constant 5.000000e-01 : f32
    %7 = vector.broadcast %cst_6 : f32 to vector<2x256xf32>
    %8 = arith.mulf %7, %6 : vector<2x256xf32>
    %9 = math.tanh %8 : vector<2x256xf32>
    %cst_7 = arith.constant 5.000000e-01 : f32
    %10 = vector.broadcast %cst_7 : f32 to vector<2x256xf32>
    %11 = arith.mulf %10, %9 : vector<2x256xf32>
    %cst_8 = arith.constant 5.000000e-01 : f32
    %12 = vector.broadcast %cst_8 : f32 to vector<2x256xf32>
    %13 = arith.addf %11, %12 : vector<2x256xf32>
    %14 = arith.truncf %13 : vector<2x256xf32> to vector<2x256xbf16>
    %c1 = arith.constant 1 : index
    %c0_9 = arith.constant 0 : index
    %c0_10 = arith.constant 0 : index
    %15 = vector.load %arg2[%c1, %c0_9, %c0_10] : memref<5x256x256xbf16, #tpu.memory_space<vmem>>, vector<1x256x256xbf16>
    %16 = vector.shape_cast %15 : vector<1x256x256xbf16> to vector<256x256xbf16>
    %cst_11 = arith.constant dense<0.000000e+00> : vector<2x256xf32>
    %17 = tpu.matmul %14, %16, %cst_11 {dimension_numbers = #tpu.dot_dimension_numbers<[1], [0], [0], [1], [0, 0, 1, 1], [], []>} : vector<2x256xbf16>, vector<256x256xbf16>, vector<2x256xf32> -> vector<2x256xf32>
    %c1_12 = arith.constant 1 : index
    %c0_13 = arith.constant 0 : index
    %18 = vector.load %arg3[%c1_12, %c0_13] : memref<7x256xf32, #tpu.memory_space<vmem>>, vector<1x256xf32>
    %19 = vector.broadcast %18 : vector<1x256xf32> to vector<2x256xf32>
    %20 = arith.addf %17, %19 : vector<2x256xf32>
    %cst_14 = arith.constant 5.000000e-01 : f32
    %21 = vector.broadcast %cst_14 : f32 to vector<2x256xf32>
    %22 = arith.mulf %21, %20 : vector<2x256xf32>
    %23 = math.tanh %22 : vector<2x256xf32>
    %cst_15 = arith.constant 5.000000e-01 : f32
    %24 = vector.broadcast %cst_15 : f32 to vector<2x256xf32>
    %25 = arith.mulf %24, %23 : vector<2x256xf32>
    %cst_16 = arith.constant 5.000000e-01 : f32
    %26 = vector.broadcast %cst_16 : f32 to vector<2x256xf32>
    %27 = arith.addf %25, %26 : vector<2x256xf32>
    %28 = arith.truncf %27 : vector<2x256xf32> to vector<2x256xbf16>
    %c2 = arith.constant 2 : index
    %c0_17 = arith.constant 0 : index
    %c0_18 = arith.constant 0 : index
    %29 = vector.load %arg2[%c2, %c0_17, %c0_18] : memref<5x256x256xbf16, #tpu.memory_space<vmem>>, vector<1x256x256xbf16>
    %30 = vector.shape_cast %29 : vector<1x256x256xbf16> to vector<256x256xbf16>
    %cst_19 = arith.constant dense<0.000000e+00> : vector<2x256xf32>
    %31 = tpu.matmul %28, %30, %cst_19 {dimension_numbers = #tpu.dot_dimension_numbers<[1], [0], [0], [1], [0, 0, 1, 1], [], []>} : vector<2x256xbf16>, vector<256x256xbf16>, vector<2x256xf32> -> vector<2x256xf32>
    %c2_20 = arith.constant 2 : index
    %c0_21 = arith.constant 0 : index
    %32 = vector.load %arg3[%c2_20, %c0_21] : memref<7x256xf32, #tpu.memory_space<vmem>>, vector<1x256xf32>
    %33 = vector.broadcast %32 : vector<1x256xf32> to vector<2x256xf32>
    %34 = arith.addf %31, %33 : vector<2x256xf32>
    %cst_22 = arith.constant 5.000000e-01 : f32
    %35 = vector.broadcast %cst_22 : f32 to vector<2x256xf32>
    %36 = arith.mulf %35, %34 : vector<2x256xf32>
    %37 = math.tanh %36 : vector<2x256xf32>
    %cst_23 = arith.constant 5.000000e-01 : f32
    %38 = vector.broadcast %cst_23 : f32 to vector<2x256xf32>
    %39 = arith.mulf %38, %37 : vector<2x256xf32>
    %cst_24 = arith.constant 5.000000e-01 : f32
    %40 = vector.broadcast %cst_24 : f32 to vector<2x256xf32>
    %41 = arith.addf %39, %40 : vector<2x256xf32>
    %42 = arith.truncf %41 : vector<2x256xf32> to vector<2x256xbf16>
    %c3 = arith.constant 3 : index
    %c0_25 = arith.constant 0 : index
    %c0_26 = arith.constant 0 : index
    %43 = vector.load %arg2[%c3, %c0_25, %c0_26] : memref<5x256x256xbf16, #tpu.memory_space<vmem>>, vector<1x256x256xbf16>
    %44 = vector.shape_cast %43 : vector<1x256x256xbf16> to vector<256x256xbf16>
    %cst_27 = arith.constant dense<0.000000e+00> : vector<2x256xf32>
    %45 = tpu.matmul %42, %44, %cst_27 {dimension_numbers = #tpu.dot_dimension_numbers<[1], [0], [0], [1], [0, 0, 1, 1], [], []>} : vector<2x256xbf16>, vector<256x256xbf16>, vector<2x256xf32> -> vector<2x256xf32>
    %c3_28 = arith.constant 3 : index
    %c0_29 = arith.constant 0 : index
    %46 = vector.load %arg3[%c3_28, %c0_29] : memref<7x256xf32, #tpu.memory_space<vmem>>, vector<1x256xf32>
    %47 = vector.broadcast %46 : vector<1x256xf32> to vector<2x256xf32>
    %48 = arith.addf %45, %47 : vector<2x256xf32>
    %cst_30 = arith.constant 5.000000e-01 : f32
    %49 = vector.broadcast %cst_30 : f32 to vector<2x256xf32>
    %50 = arith.mulf %49, %48 : vector<2x256xf32>
    %51 = math.tanh %50 : vector<2x256xf32>
    %cst_31 = arith.constant 5.000000e-01 : f32
    %52 = vector.broadcast %cst_31 : f32 to vector<2x256xf32>
    %53 = arith.mulf %52, %51 : vector<2x256xf32>
    %cst_32 = arith.constant 5.000000e-01 : f32
    %54 = vector.broadcast %cst_32 : f32 to vector<2x256xf32>
    %55 = arith.addf %53, %54 : vector<2x256xf32>
    %56 = arith.truncf %55 : vector<2x256xf32> to vector<2x256xbf16>
    %c4 = arith.constant 4 : index
    %c0_33 = arith.constant 0 : index
    %c0_34 = arith.constant 0 : index
    %57 = vector.load %arg2[%c4, %c0_33, %c0_34] : memref<5x256x256xbf16, #tpu.memory_space<vmem>>, vector<1x256x256xbf16>
    %58 = vector.shape_cast %57 : vector<1x256x256xbf16> to vector<256x256xbf16>
    %cst_35 = arith.constant dense<0.000000e+00> : vector<2x256xf32>
    %59 = tpu.matmul %56, %58, %cst_35 {dimension_numbers = #tpu.dot_dimension_numbers<[1], [0], [0], [1], [0, 0, 1, 1], [], []>} : vector<2x256xbf16>, vector<256x256xbf16>, vector<2x256xf32> -> vector<2x256xf32>
    %c4_36 = arith.constant 4 : index
    %c0_37 = arith.constant 0 : index
    %60 = vector.load %arg3[%c4_36, %c0_37] : memref<7x256xf32, #tpu.memory_space<vmem>>, vector<1x256xf32>
    %61 = vector.broadcast %60 : vector<1x256xf32> to vector<2x256xf32>
    %62 = arith.addf %59, %61 : vector<2x256xf32>
    %cst_38 = arith.constant 5.000000e-01 : f32
    %63 = vector.broadcast %cst_38 : f32 to vector<2x256xf32>
    %64 = arith.mulf %63, %62 : vector<2x256xf32>
    %65 = math.tanh %64 : vector<2x256xf32>
    %cst_39 = arith.constant 5.000000e-01 : f32
    %66 = vector.broadcast %cst_39 : f32 to vector<2x256xf32>
    %67 = arith.mulf %66, %65 : vector<2x256xf32>
    %cst_40 = arith.constant 5.000000e-01 : f32
    %68 = vector.broadcast %cst_40 : f32 to vector<2x256xf32>
    %69 = arith.addf %67, %68 : vector<2x256xf32>
    %c5 = arith.constant 5 : index
    %c0_41 = arith.constant 0 : index
    %70 = vector.load %arg3[%c5, %c0_41] : memref<7x256xf32, #tpu.memory_space<vmem>>, vector<1x256xf32>
    %c6 = arith.constant 6 : index
    %c0_42 = arith.constant 0 : index
    %71 = vector.load %arg3[%c6, %c0_42] : memref<7x256xf32, #tpu.memory_space<vmem>>, vector<1x1xf32>
    %72 = vector.broadcast %70 : vector<1x256xf32> to vector<2x256xf32>
    %73 = arith.mulf %69, %72 : vector<2x256xf32>
    %cst_43 = arith.constant dense<0.000000e+00> : vector<2xf32>
    %74 = vector.multi_reduction <add>, %73, %cst_43 [1] : vector<2x256xf32> to vector<2xf32>
    %75 = vector.shape_cast %74 : vector<2xf32> to vector<2x1xf32>
    %76 = vector.broadcast %71 : vector<1x1xf32> to vector<2x1xf32>
    %77 = arith.addf %75, %76 : vector<2x1xf32>
    %cst_44 = arith.constant 5.000000e-01 : f32
    %78 = vector.broadcast %cst_44 : f32 to vector<2x1xf32>
    %79 = arith.mulf %78, %77 : vector<2x1xf32>
    %80 = math.tanh %79 : vector<2x1xf32>
    %cst_45 = arith.constant 5.000000e-01 : f32
    %81 = vector.broadcast %cst_45 : f32 to vector<2x1xf32>
    %82 = arith.mulf %81, %80 : vector<2x1xf32>
    %cst_46 = arith.constant 5.000000e-01 : f32
    %83 = vector.broadcast %cst_46 : f32 to vector<2x1xf32>
    %84 = arith.addf %82, %83 : vector<2x1xf32>
    %c0_47 = arith.constant 0 : index
    %c0_48 = arith.constant 0 : index
    %85 = vector.load %arg4[%c0_47, %c0_48] : memref<2x1xf32, #tpu.memory_space<vmem>>, vector<2x1xf32>
    tpu.vector_store %arg4[%c0_47, %c0_48], %84 {strides = array<i32>} : memref<2x1xf32, #tpu.memory_space<vmem>>, vector<2x1xf32>,
    return
  }
  func.func @transform_0(%arg0: i32) -> (i32, i32) {
    %c0_i32 = arith.constant 0 : i32
    %c0_i32_0 = arith.constant 0 : i32
    return %arg0, %c0_i32 : i32, i32
  }
  func.func @transform_1(%arg0: i32) -> (i32, i32, i32) {
    %c0_i32 = arith.constant 0 : i32
    %c0_i32_0 = arith.constant 0 : i32
    %c0_i32_1 = arith.constant 0 : i32
    %c0_i32_2 = arith.constant 0 : i32
    return %c0_i32, %c0_i32_0, %c0_i32_1 : i32, i32, i32
  }
  func.func @transform_2(%arg0: i32) -> (i32, i32) {
    %c0_i32 = arith.constant 0 : i32
    %c0_i32_0 = arith.constant 0 : i32
    %c0_i32_1 = arith.constant 0 : i32
    return %c0_i32, %c0_i32_0 : i32, i32
  }
  func.func @transform_3(%arg0: i32) -> (i32, i32) {
    %c0_i32 = arith.constant 0 : i32
    %c0_i32_0 = arith.constant 0 : i32
    return %arg0, %c0_i32 : i32, i32
  }
}

</mosaic_0001>

<llo_original>
// kernel: low_grade_discriminator.1
$region0: #{low_grade_discriminator.1}
  #allocation0 [shape = 'u32[]', space=smem, size = 0x4, offset = 0x4, fixed_abs, tag = 'smem constant byte address 0x4 - core index']
  #allocation1 [shape = 'u32[72,128]{1,0:T(1,128)}', space=vmem, size = 0x9000, scoped, tag = 'internal scratch']
  %s0 = inlined_call_operand.vmem [shape: bf16[2,256], index: 0, kind: input, shape index: {}]
  %s1 = inlined_call_operand.hbm [shape: bf16[5,256,256], index: 1, kind: input, shape index: {}]
  %s2 = inlined_call_operand.vmem [shape: f32[7,256], index: 2, kind: input, shape index: {}]
  %s3 = inlined_call_operand.vmem [shape: f32[2,1], index: 3, kind: output, shape index: {}]
  %s4 = sld [smem:[#allocation0]]
  $region26: #{low_grade_discriminator.1} parent=0
    _
  %s6 = ssub.s32 1, %s4
  %s7 = scalar_select 0, %s6, %s4
  $region1: #{low_grade_discriminator.1} parent=0
    #allocation2 [shape = 'u8[655360]{0}', space=vmem, size = 0xa0000, scoped, tag = 'input window, operand 1, single buffered']
    #allocation3 [shape = 's32[1]{0}', space=sflag, size = 0x4, scoped, tag = 'scoped memory for low_grade_discriminator.1']
    %8 = vsyncpa [#allocation3], 0
    // Predicated region
    $region2: #{low_grade_discriminator.1} parent=1 // pred_check
      _
    $region3: #{low_grade_discriminator.1} parent=1 // pred_check_branch
      %10 = sbr.rel (0) target = $region5
    $region4: #{low_grade_discriminator.1} parent=1 // pred_region
      _
    $region5: #{low_grade_discriminator.1} parent=1 // pred_fallthru
      _
    // Predicated region
    $region6: #{low_grade_discriminator.1} parent=1 // pred_check
      _
    $region7: #{low_grade_discriminator.1} parent=1 // pred_check_branch
      %12 = sbr.rel (0) target = $region9
    $region8: #{low_grade_discriminator.1} parent=1 // pred_region
      %14 = vsyncadd [#allocation3], 0
      %s15 = sshll.u32 %s1, 4
      %s16 = int_to_ptr.hbm [resolvable:$true] %s15
      %s17 = sshll.u32 [#allocation2], 4
      %s18 = int_to_ptr.vmem [resolvable:$true] %s17
      %23 = dma.hbm_to_vmem [thread:$0]  %s16, 20480, %s18, [#allocation3], 128, 128, 8
    $region9: #{low_grade_discriminator.1} parent=1 // pred_fallthru
      _
    // Predicated region
    $region10: #{low_grade_discriminator.1} parent=1 // pred_check
      _
    $region11: #{low_grade_discriminator.1} parent=1 // pred_check_branch
      %25 = sbr.rel (0) target = $region13
    $region12: #{low_grade_discriminator.1} parent=1 // pred_region
      _
    $region13: #{low_grade_discriminator.1} parent=1 // pred_fallthru
      _
    // Predicated region
    $region14: #{low_grade_discriminator.1} parent=1 // pred_check
      _
    $region15: #{low_grade_discriminator.1} parent=1 // pred_check_branch
      %27 = sbr.rel (0) target = $region17
    $region16: #{low_grade_discriminator.1} parent=1 // pred_region
      %29 = dma.done [#allocation3], 20480
    $region17: #{low_grade_discriminator.1} parent=1 // pred_fallthru
      _
    %v30 = vld [vmem:[%s0] sm:$0x3]
    %v31 = vld [vmem:[#allocation2] sm:$0xff]
    %v32 = vld [vmem:[#allocation2 + $0x8] sm:$0xff]
    %v33 = vld [vmem:[#allocation2 + $0x10] sm:$0xff]
    %v34 = vld [vmem:[#allocation2 + $0x18] sm:$0xff]
    %v35 = vld [vmem:[#allocation2 + $0x20] sm:$0xff]
    %v36 = vld [vmem:[#allocation2 + $0x28] sm:$0xff]
    %v37 = vld [vmem:[#allocation2 + $0x30] sm:$0xff]
    %v38 = vld [vmem:[#allocation2 + $0x38] sm:$0xff]
    %v39 = vld [vmem:[#allocation2 + $0x40] sm:$0xff]
    %v40 = vld [vmem:[#allocation2 + $0x48] sm:$0xff]
    %v41 = vld [vmem:[#allocation2 + $0x50] sm:$0xff]
    %v42 = vld [vmem:[#allocation2 + $0x58] sm:$0xff]
    %v43 = vld [vmem:[#allocation2 + $0x60] sm:$0xff]
    %v44 = vld [vmem:[#allocation2 + $0x68] sm:$0xff]
    %v45 = vld [vmem:[#allocation2 + $0x70] sm:$0xff]
    %v46 = vld [vmem:[#allocation2 + $0x78] sm:$0xff]
    %v47 = vld [vmem:[#allocation2 + $0x80] sm:$0xff]
    %v48 = vld [vmem:[#allocation2 + $0x88] sm:$0xff]
    %v49 = vld [vmem:[#allocation2 + $0x90] sm:$0xff]
    %v50 = vld [vmem:[#allocation2 + $0x98] sm:$0xff]
    %v51 = vld [vmem:[#allocation2 + $0xa0] sm:$0xff]
    %v52 = vld [vmem:[#allocation2 + $0xa8] sm:$0xff]
    %v53 = vld [vmem:[#allocation2 + $0xb0] sm:$0xff]
    %v54 = vld [vmem:[#allocation2 + $0xb8] sm:$0xff]
    %v55 = vld [vmem:[#allocation2 + $0xc0] sm:$0xff]
    %v56 = vld [vmem:[#allocation2 + $0xc8] sm:$0xff]
    %v57 = vld [vmem:[#allocation2 + $0xd0] sm:$0xff]
    %v58 = vld [vmem:[#allocation2 + $0xd8] sm:$0xff]
    %v59 = vld [vmem:[#allocation2 + $0xe0] sm:$0xff]
    %v60 = vld [vmem:[#allocation2 + $0xe8] sm:$0xff]
    %v61 = vld [vmem:[#allocation2 + $0xf0] sm:$0xff]
    %v62 = vld [vmem:[#allocation2 + $0xf8] sm:$0xff]
    %v63 = vld [vmem:[%s2] ss:$8 sm:$0x3]
    %v65 = vperm.slane %v63, 0
    %v66 = vperm.slane %v63, 1
    %70 = vst [vmem:[#allocation1] ss:$9 sm:$0xff] %v30
    %v71 = vld [vmem:[#allocation1] sm:$0xff]
    %v72 = vld [vmem:[#allocation1 + $0x9] sm:$0xff]
    %v107 = vunpack.c.l.b16 %v31
    %v108 = vunpack.c.h.b16 %v31
    %v109 = vunpack.c.l.b16 %v32
    %v110 = vunpack.c.h.b16 %v32
    %v111 = vunpack.c.l.b16 %v33
    %v112 = vunpack.c.h.b16 %v33
    %v113 = vunpack.c.l.b16 %v34
    %v114 = vunpack.c.h.b16 %v34
    %v115 = vunpack.c.l.b16 %v35
    %v116 = vunpack.c.h.b16 %v35
    %v117 = vunpack.c.l.b16 %v36
    %v118 = vunpack.c.h.b16 %v36
    %v119 = vunpack.c.l.b16 %v37
    %v120 = vunpack.c.h.b16 %v37
    %v121 = vunpack.c.l.b16 %v38
    %v122 = vunpack.c.h.b16 %v38
    %v123 = vunpack.c.l.b16 %v39
    %v124 = vunpack.c.h.b16 %v39
    %v125 = vunpack.c.l.b16 %v40
    %v126 = vunpack.c.h.b16 %v40
    %v127 = vunpack.c.l.b16 %v41
    %v128 = vunpack.c.h.b16 %v41
    %v129 = vunpack.c.l.b16 %v42
    %v130 = vunpack.c.h.b16 %v42
    %v131 = vunpack.c.l.b16 %v43
    %v132 = vunpack.c.h.b16 %v43
    %v133 = vunpack.c.l.b16 %v44
    %v134 = vunpack.c.h.b16 %v44
    %v135 = vunpack.c.l.b16 %v45
    %v136 = vunpack.c.h.b16 %v45
    %v137 = vunpack.c.l.b16 %v46
    %v138 = vunpack.c.h.b16 %v46
    %v139 = vunpack.c.l.b16 %v47
    %v140 = vunpack.c.h.b16 %v47
    %v141 = vunpack.c.l.b16 %v48
    %v142 = vunpack.c.h.b16 %v48
    %v143 = vunpack.c.l.b16 %v49
    %v144 = vunpack.c.h.b16 %v49
    %v145 = vunpack.c.l.b16 %v50
    %v146 = vunpack.c.h.b16 %v50
    %v147 = vunpack.c.l.b16 %v51
    %v148 = vunpack.c.h.b16 %v51
    %v149 = vunpack.c.l.b16 %v52
    %v150 = vunpack.c.h.b16 %v52
    %v151 = vunpack.c.l.b16 %v53
    %v152 = vunpack.c.h.b16 %v53
    %v153 = vunpack.c.l.b16 %v54
    %v154 = vunpack.c.h.b16 %v54
    %v155 = vunpack.c.l.b16 %v55
    %v156 = vunpack.c.h.b16 %v55
    %v157 = vunpack.c.l.b16 %v56
    %v158 = vunpack.c.h.b16 %v56
    %v159 = vunpack.c.l.b16 %v57
    %v160 = vunpack.c.h.b16 %v57
    %v161 = vunpack.c.l.b16 %v58
    %v162 = vunpack.c.h.b16 %v58
    %v163 = vunpack.c.l.b16 %v59
    %v164 = vunpack.c.h.b16 %v59
    %v165 = vunpack.c.l.b16 %v60
    %v166 = vunpack.c.h.b16 %v60
    %v167 = vunpack.c.l.b16 %v61
    %v168 = vunpack.c.h.b16 %v61
    %v169 = vunpack.c.l.b16 %v62
    %v170 = vunpack.c.h.b16 %v62
    %v171 = vpack.c.b16 %v109, %v107
    %v172 = vpack.c.b16 %v110, %v108
    %v173 = vpack.c.b16 %v113, %v111
    %v174 = vpack.c.b16 %v114, %v112
    %v175 = vpack.c.b16 %v117, %v115
    %v176 = vpack.c.b16 %v118, %v116
    %v177 = vpack.c.b16 %v121, %v119
    %v178 = vpack.c.b16 %v122, %v120
    %v179 = vpack.c.b16 %v125, %v123
    %v180 = vpack.c.b16 %v126, %v124
    %v181 = vpack.c.b16 %v129, %v127
    %v182 = vpack.c.b16 %v130, %v128
    %v183 = vpack.c.b16 %v133, %v131
    %v184 = vpack.c.b16 %v134, %v132
    %v185 = vpack.c.b16 %v137, %v135
    %v186 = vpack.c.b16 %v138, %v136
    %v187 = vpack.c.b16 %v141, %v139
    %v188 = vpack.c.b16 %v142, %v140
    %v189 = vpack.c.b16 %v145, %v143
    %v190 = vpack.c.b16 %v146, %v144
    %v191 = vpack.c.b16 %v149, %v147
    %v192 = vpack.c.b16 %v150, %v148
    %v193 = vpack.c.b16 %v153, %v151
    %v194 = vpack.c.b16 %v154, %v152
    %v195 = vpack.c.b16 %v157, %v155
    %v196 = vpack.c.b16 %v158, %v156
    %v197 = vpack.c.b16 %v161, %v159
    %v198 = vpack.c.b16 %v162, %v160
    %v199 = vpack.c.b16 %v165, %v163
    %v200 = vpack.c.b16 %v166, %v164
    %v201 = vpack.c.b16 %v169, %v167
    %v202 = vpack.c.b16 %v170, %v168
    %235 = vmatpush.bf16.msra.mxu0 %v185
    %236 = vmatpush.bf16.msra.mxu0 %v183
    %237 = vmatpush.bf16.msra.mxu0 %v181
    %238 = vmatpush.bf16.msra.mxu0 %v179
    %239 = vmatpush.bf16.msra.mxu0 %v177
    %240 = vmatpush.bf16.msra.mxu0 %v175
    %241 = vmatpush.bf16.msra.mxu0 %v173
    %242 = vmatpush.bf16.msra.mxu0 %v171
    %243 = vmatmul.bf16.gmra.mxu0 %v71
    %v244 = vpop.f32.mrf.mxu0
    %v245 = vadd.f32 %v65, %v244
    %v246 = vpop.f32.mrf.mxu0
    %247 = vdwg.mxu0
    %248 = vmatpush.bf16.msra.mxu0 %v201
    %249 = vmatpush.bf16.msra.mxu0 %v199
    %250 = vmatpush.bf16.msra.mxu0 %v197
    %251 = vmatpush.bf16.msra.mxu0 %v195
    %252 = vmatpush.bf16.msra.mxu0 %v193
    %253 = vmatpush.bf16.msra.mxu0 %v191
    %254 = vmatpush.bf16.msra.mxu0 %v189
    %255 = vmatpush.bf16.msra.mxu0 %v187
    %256 = vmatmul.bf16.gmra.mxu0 %v72
    %v257 = vpop.f32.mrf.mxu0
    %v258 = vadd.f32 %v245, %v257
    %v259 = vpop.f32.mrf.mxu0
    %260 = vdwg.mxu0
    %261 = vmatpush.bf16.msra.mxu0 %v186
    %262 = vmatpush.bf16.msra.mxu0 %v184
    %263 = vmatpush.bf16.msra.mxu0 %v182
    %264 = vmatpush.bf16.msra.mxu0 %v180
    %265 = vmatpush.bf16.msra.mxu0 %v178
    %266 = vmatpush.bf16.msra.mxu0 %v176
    %267 = vmatpush.bf16.msra.mxu0 %v174
    %268 = vmatpush.bf16.msra.mxu0 %v172
    %269 = vmatmul.bf16.gmra.mxu0 %v71
    %v270 = vpop.f32.mrf.mxu0
    %v271 = vadd.f32 %v66, %v270
    %v272 = vpop.f32.mrf.mxu0
    %273 = vdwg.mxu0
    %274 = vmatpush.bf16.msra.mxu0 %v202
    %275 = vmatpush.bf16.msra.mxu0 %v200
    %276 = vmatpush.bf16.msra.mxu0 %v198
    %277 = vmatpush.bf16.msra.mxu0 %v196
    %278 = vmatpush.bf16.msra.mxu0 %v194
    %279 = vmatpush.bf16.msra.mxu0 %v192
    %280 = vmatpush.bf16.msra.mxu0 %v190
    %281 = vmatpush.bf16.msra.mxu0 %v188
    %282 = vmatmul.bf16.gmra.mxu0 %v72
    %v283 = vpop.f32.mrf.mxu0
    %v284 = vadd.f32 %v271, %v283
    %v285 = vpop.f32.mrf.mxu0
    %286 = vdwg.mxu0
    %v287 = vmul.f32 %v258, 0.5
    %v288 = vmul.f32 %v284, 0.5
    %v289 = vtanh.pop %v287
    %v290 = vtanh.pop %v288
    %v291 = vmul.f32 %v289, 0.5
    %v292 = vmul.f32 %v290, 0.5
    %v293 = vadd.f32 %v291, 0.5
    %v294 = vadd.f32 %v292, 0.5
    %v295 = vpack.c.bf16 %v293, %v293
    %v296 = vpack.c.bf16 %v294, %v294
    %s297 = scalar_lea.vmem [#allocation2], 256
    %v298 = vld [vmem:[%s297] sm:$0xff]
    %v299 = vld [vmem:[%s297 + $0x8] sm:$0xff]
    %v300 = vld [vmem:[%s297 + $0x10] sm:$0xff]
    %v301 = vld [vmem:[%s297 + $0x18] sm:$0xff]
    %v302 = vld [vmem:[%s297 + $0x20] sm:$0xff]
    %v303 = vld [vmem:[%s297 + $0x28] sm:$0xff]
    %v304 = vld [vmem:[%s297 + $0x30] sm:$0xff]
    %v305 = vld [vmem:[%s297 + $0x38] sm:$0xff]
    %v306 = vld [vmem:[%s297 + $0x40] sm:$0xff]
    %v307 = vld [vmem:[%s297 + $0x48] sm:$0xff]
    %v308 = vld [vmem:[%s297 + $0x50] sm:$0xff]
    %v309 = vld [vmem:[%s297 + $0x58] sm:$0xff]
    %v310 = vld [vmem:[%s297 + $0x60] sm:$0xff]
    %v311 = vld [vmem:[%s297 + $0x68] sm:$0xff]
    %v312 = vld [vmem:[%s297 + $0x70] sm:$0xff]
    %v313 = vld [vmem:[%s297 + $0x78] sm:$0xff]
    %v314 = vld [vmem:[%s297 + $0x80] sm:$0xff]
    %v315 = vld [vmem:[%s297 + $0x88] sm:$0xff]
    %v316 = vld [vmem:[%s297 + $0x90] sm:$0xff]
    %v317 = vld [vmem:[%s297 + $0x98] sm:$0xff]
    %v318 = vld [vmem:[%s297 + $0xa0] sm:$0xff]
    %v319 = vld [vmem:[%s297 + $0xa8] sm:$0xff]
    %v320 = vld [vmem:[%s297 + $0xb0] sm:$0xff]
    %v321 = vld [vmem:[%s297 + $0xb8] sm:$0xff]
    %v322 = vld [vmem:[%s297 + $0xc0] sm:$0xff]
    %v323 = vld [vmem:[%s297 + $0xc8] sm:$0xff]
    %v324 = vld [vmem:[%s297 + $0xd0] sm:$0xff]
    %v325 = vld [vmem:[%s297 + $0xd8] sm:$0xff]
    %v326 = vld [vmem:[%s297 + $0xe0] sm:$0xff]
    %v327 = vld [vmem:[%s297 + $0xe8] sm:$0xff]
    %v328 = vld [vmem:[%s297 + $0xf0] sm:$0xff]
    %v329 = vld [vmem:[%s297 + $0xf8] sm:$0xff]
    %s330 = scalar_lea.vmem %s2, 1
    %v331 = vld [vmem:[%s330] ss:$8 sm:$0x3]
    %v333 = vperm.slane %v331, 0
    %v334 = vperm.slane %v331, 1
    %v369 = vunpack.c.l.b16 %v298
    %v370 = vunpack.c.h.b16 %v298
    %v371 = vunpack.c.l.b16 %v299
    %v372 = vunpack.c.h.b16 %v299
    %v373 = vunpack.c.l.b16 %v300
    %v374 = vunpack.c.h.b16 %v300
    %v375 = vunpack.c.l.b16 %v301
    %v376 = vunpack.c.h.b16 %v301
    %v377 = vunpack.c.l.b16 %v302
    %v378 = vunpack.c.h.b16 %v302
    %v379 = vunpack.c.l.b16 %v303
    %v380 = vunpack.c.h.b16 %v303
    %v381 = vunpack.c.l.b16 %v304
    %v382 = vunpack.c.h.b16 %v304
    %v383 = vunpack.c.l.b16 %v305
    %v384 = vunpack.c.h.b16 %v305
    %v385 = vunpack.c.l.b16 %v306
    %v386 = vunpack.c.h.b16 %v306
    %v387 = vunpack.c.l.b16 %v307
    %v388 = vunpack.c.h.b16 %v307
    %v389 = vunpack.c.l.b16 %v308
    %v390 = vunpack.c.h.b16 %v308
    %v391 = vunpack.c.l.b16 %v309
    %v392 = vunpack.c.h.b16 %v309
    %v393 = vunpack.c.l.b16 %v310
    %v394 = vunpack.c.h.b16 %v310
    %v395 = vunpack.c.l.b16 %v311
    %v396 = vunpack.c.h.b16 %v311
    %v397 = vunpack.c.l.b16 %v312
    %v398 = vunpack.c.h.b16 %v312
    %v399 = vunpack.c.l.b16 %v313
    %v400 = vunpack.c.h.b16 %v313
    %v401 = vunpack.c.l.b16 %v314
    %v402 = vunpack.c.h.b16 %v314
    %v403 = vunpack.c.l.b16 %v315
    %v404 = vunpack.c.h.b16 %v315
    %v405 = vunpack.c.l.b16 %v316
    %v406 = vunpack.c.h.b16 %v316
    %v407 = vunpack.c.l.b16 %v317
    %v408 = vunpack.c.h.b16 %v317
    %v409 = vunpack.c.l.b16 %v318
    %v410 = vunpack.c.h.b16 %v318
    %v411 = vunpack.c.l.b16 %v319
    %v412 = vunpack.c.h.b16 %v319
    %v413 = vunpack.c.l.b16 %v320
    %v414 = vunpack.c.h.b16 %v320
    %v415 = vunpack.c.l.b16 %v321
    %v416 = vunpack.c.h.b16 %v321
    %v417 = vunpack.c.l.b16 %v322
    %v418 = vunpack.c.h.b16 %v322
    %v419 = vunpack.c.l.b16 %v323
    %v420 = vunpack.c.h.b16 %v323
    %v421 = vunpack.c.l.b16 %v324
    %v422 = vunpack.c.h.b16 %v324
    %v423 = vunpack.c.l.b16 %v325
    %v424 = vunpack.c.h.b16 %v325
    %v425 = vunpack.c.l.b16 %v326
    %v426 = vunpack.c.h.b16 %v326
    %v427 = vunpack.c.l.b16 %v327
    %v428 = vunpack.c.h.b16 %v327
    %v429 = vunpack.c.l.b16 %v328
    %v430 = vunpack.c.h.b16 %v328
    %v431 = vunpack.c.l.b16 %v329
    %v432 = vunpack.c.h.b16 %v329
    %v433 = vpack.c.b16 %v371, %v369
    %v434 = vpack.c.b16 %v372, %v370
    %v435 = vpack.c.b16 %v375, %v373
    %v436 = vpack.c.b16 %v376, %v374
    %v437 = vpack.c.b16 %v379, %v377
    %v438 = vpack.c.b16 %v380, %v378
    %v439 = vpack.c.b16 %v383, %v381
    %v440 = vpack.c.b16 %v384, %v382
    %v441 = vpack.c.b16 %v387, %v385
    %v442 = vpack.c.b16 %v388, %v386
    %v443 = vpack.c.b16 %v391, %v389
    %v444 = vpack.c.b16 %v392, %v390
    %v445 = vpack.c.b16 %v395, %v393
    %v446 = vpack.c.b16 %v396, %v394
    %v447 = vpack.c.b16 %v399, %v397
    %v448 = vpack.c.b16 %v400, %v398
    %v449 = vpack.c.b16 %v403, %v401
    %v450 = vpack.c.b16 %v404, %v402
    %v451 = vpack.c.b16 %v407, %v405
    %v452 = vpack.c.b16 %v408, %v406
    %v453 = vpack.c.b16 %v411, %v409
    %v454 = vpack.c.b16 %v412, %v410
    %v455 = vpack.c.b16 %v415, %v413
    %v456 = vpack.c.b16 %v416, %v414
    %v457 = vpack.c.b16 %v419, %v417
    %v458 = vpack.c.b16 %v420, %v418
    %v459 = vpack.c.b16 %v423, %v421
    %v460 = vpack.c.b16 %v424, %v422
    %v461 = vpack.c.b16 %v427, %v425
    %v462 = vpack.c.b16 %v428, %v426
    %v463 = vpack.c.b16 %v431, %v429
    %v464 = vpack.c.b16 %v432, %v430
    %497 = vmatpush.bf16.msra.mxu0 %v447
    %498 = vmatpush.bf16.msra.mxu0 %v445
    %499 = vmatpush.bf16.msra.mxu0 %v443
    %500 = vmatpush.bf16.msra.mxu0 %v441
    %501 = vmatpush.bf16.msra.mxu0 %v439
    %502 = vmatpush.bf16.msra.mxu0 %v437
    %503 = vmatpush.bf16.msra.mxu0 %v435
    %504 = vmatpush.bf16.msra.mxu0 %v433
    %505 = vmatmul.bf16.gmra.mxu0 %v295
    %v506 = vpop.f32.mrf.mxu0
    %v507 = vadd.f32 %v333, %v506
    %v508 = vpop.f32.mrf.mxu0
    %509 = vdwg.mxu0
    %510 = vmatpush.bf16.msra.mxu0 %v463
    %511 = vmatpush.bf16.msra.mxu0 %v461
    %512 = vmatpush.bf16.msra.mxu0 %v459
    %513 = vmatpush.bf16.msra.mxu0 %v457
    %514 = vmatpush.bf16.msra.mxu0 %v455
    %515 = vmatpush.bf16.msra.mxu0 %v453
    %516 = vmatpush.bf16.msra.mxu0 %v451
    %517 = vmatpush.bf16.msra.mxu0 %v449
    %518 = vmatmul.bf16.gmra.mxu0 %v296
    %v519 = vpop.f32.mrf.mxu0
    %v520 = vadd.f32 %v507, %v519
    %v521 = vpop.f32.mrf.mxu0
    %522 = vdwg.mxu0
    %523 = vmatpush.bf16.msra.mxu0 %v448
    %524 = vmatpush.bf16.msra.mxu0 %v446
    %525 = vmatpush.bf16.msra.mxu0 %v444
    %526 = vmatpush.bf16.msra.mxu0 %v442
    %527 = vmatpush.bf16.msra.mxu0 %v440
    %528 = vmatpush.bf16.msra.mxu0 %v438
    %529 = vmatpush.bf16.msra.mxu0 %v436
    %530 = vmatpush.bf16.msra.mxu0 %v434
    %531 = vmatmul.bf16.gmra.mxu0 %v295
    %v532 = vpop.f32.mrf.mxu0
    %v533 = vadd.f32 %v334, %v532
    %v534 = vpop.f32.mrf.mxu0
    %535 = vdwg.mxu0
    %536 = vmatpush.bf16.msra.mxu0 %v464
    %537 = vmatpush.bf16.msra.mxu0 %v462
    %538 = vmatpush.bf16.msra.mxu0 %v460
    %539 = vmatpush.bf16.msra.mxu0 %v458
    %540 = vmatpush.bf16.msra.mxu0 %v456
    %541 = vmatpush.bf16.msra.mxu0 %v454
    %542 = vmatpush.bf16.msra.mxu0 %v452
    %543 = vmatpush.bf16.msra.mxu0 %v450
    %544 = vmatmul.bf16.gmra.mxu0 %v296
    %v545 = vpop.f32.mrf.mxu0
    %v546 = vadd.f32 %v533, %v545
    %v547 = vpop.f32.mrf.mxu0
    %548 = vdwg.mxu0
    %v549 = vmul.f32 %v520, 0.5
    %v550 = vmul.f32 %v546, 0.5
    %v551 = vtanh.pop %v549
    %v552 = vtanh.pop %v550
    %v553 = vmul.f32 %v551, 0.5
    %v554 = vmul.f32 %v552, 0.5
    %v555 = vadd.f32 %v553, 0.5
    %v556 = vadd.f32 %v554, 0.5
    %v557 = vpack.c.bf16 %v555, %v555
    %v558 = vpack.c.bf16 %v556, %v556
    %s559 = scalar_lea.vmem [#allocation2], 512
    %v560 = vld [vmem:[%s559] sm:$0xff]
    %v561 = vld [vmem:[%s559 + $0x8] sm:$0xff]
    %v562 = vld [vmem:[%s559 + $0x10] sm:$0xff]
    %v563 = vld [vmem:[%s559 + $0x18] sm:$0xff]
    %v564 = vld [vmem:[%s559 + $0x20] sm:$0xff]
    %v565 = vld [vmem:[%s559 + $0x28] sm:$0xff]
    %v566 = vld [vmem:[%s559 + $0x30] sm:$0xff]
    %v567 = vld [vmem:[%s559 + $0x38] sm:$0xff]
    %v568 = vld [vmem:[%s559 + $0x40] sm:$0xff]
    %v569 = vld [vmem:[%s559 + $0x48] sm:$0xff]
    %v570 = vld [vmem:[%s559 + $0x50] sm:$0xff]
    %v571 = vld [vmem:[%s559 + $0x58] sm:$0xff]
    %v572 = vld [vmem:[%s559 + $0x60] sm:$0xff]
    %v573 = vld [vmem:[%s559 + $0x68] sm:$0xff]
    %v574 = vld [vmem:[%s559 + $0x70] sm:$0xff]
    %v575 = vld [vmem:[%s559 + $0x78] sm:$0xff]
    %v576 = vld [vmem:[%s559 + $0x80] sm:$0xff]
    %v577 = vld [vmem:[%s559 + $0x88] sm:$0xff]
    %v578 = vld [vmem:[%s559 + $0x90] sm:$0xff]
    %v579 = vld [vmem:[%s559 + $0x98] sm:$0xff]
    %v580 = vld [vmem:[%s559 + $0xa0] sm:$0xff]
    %v581 = vld [vmem:[%s559 + $0xa8] sm:$0xff]
    %v582 = vld [vmem:[%s559 + $0xb0] sm:$0xff]
    %v583 = vld [vmem:[%s559 + $0xb8] sm:$0xff]
    %v584 = vld [vmem:[%s559 + $0xc0] sm:$0xff]
    %v585 = vld [vmem:[%s559 + $0xc8] sm:$0xff]
    %v586 = vld [vmem:[%s559 + $0xd0] sm:$0xff]
    %v587 = vld [vmem:[%s559 + $0xd8] sm:$0xff]
    %v588 = vld [vmem:[%s559 + $0xe0] sm:$0xff]
    %v589 = vld [vmem:[%s559 + $0xe8] sm:$0xff]
    %v590 = vld [vmem:[%s559 + $0xf0] sm:$0xff]
    %v591 = vld [vmem:[%s559 + $0xf8] sm:$0xff]
    %s592 = scalar_lea.vmem %s2, 2
    %v593 = vld [vmem:[%s592] ss:$8 sm:$0x3]
    %v595 = vperm.slane %v593, 0
    %v596 = vperm.slane %v593, 1
    %v631 = vunpack.c.l.b16 %v560
    %v632 = vunpack.c.h.b16 %v560
    %v633 = vunpack.c.l.b16 %v561
    %v634 = vunpack.c.h.b16 %v561
    %v635 = vunpack.c.l.b16 %v562
    %v636 = vunpack.c.h.b16 %v562
    %v637 = vunpack.c.l.b16 %v563
    %v638 = vunpack.c.h.b16 %v563
    %v639 = vunpack.c.l.b16 %v564
    %v640 = vunpack.c.h.b16 %v564
    %v641 = vunpack.c.l.b16 %v565
    %v642 = vunpack.c.h.b16 %v565
    %v643 = vunpack.c.l.b16 %v566
    %v644 = vunpack.c.h.b16 %v566
    %v645 = vunpack.c.l.b16 %v567
    %v646 = vunpack.c.h.b16 %v567
    %v647 = vunpack.c.l.b16 %v568
    %v648 = vunpack.c.h.b16 %v568
    %v649 = vunpack.c.l.b16 %v569
    %v650 = vunpack.c.h.b16 %v569
    %v651 = vunpack.c.l.b16 %v570
    %v652 = vunpack.c.h.b16 %v570
    %v653 = vunpack.c.l.b16 %v571
    %v654 = vunpack.c.h.b16 %v571
    %v655 = vunpack.c.l.b16 %v572
    %v656 = vunpack.c.h.b16 %v572
    %v657 = vunpack.c.l.b16 %v573
    %v658 = vunpack.c.h.b16 %v573
    %v659 = vunpack.c.l.b16 %v574
    %v660 = vunpack.c.h.b16 %v574
    %v661 = vunpack.c.l.b16 %v575
    %v662 = vunpack.c.h.b16 %v575
    %v663 = vunpack.c.l.b16 %v576
    %v664 = vunpack.c.h.b16 %v576
    %v665 = vunpack.c.l.b16 %v577
    %v666 = vunpack.c.h.b16 %v577
    %v667 = vunpack.c.l.b16 %v578
    %v668 = vunpack.c.h.b16 %v578
    %v669 = vunpack.c.l.b16 %v579
    %v670 = vunpack.c.h.b16 %v579
    %v671 = vunpack.c.l.b16 %v580
    %v672 = vunpack.c.h.b16 %v580
    %v673 = vunpack.c.l.b16 %v581
    %v674 = vunpack.c.h.b16 %v581
    %v675 = vunpack.c.l.b16 %v582
    %v676 = vunpack.c.h.b16 %v582
    %v677 = vunpack.c.l.b16 %v583
    %v678 = vunpack.c.h.b16 %v583
    %v679 = vunpack.c.l.b16 %v584
    %v680 = vunpack.c.h.b16 %v584
    %v681 = vunpack.c.l.b16 %v585
    %v682 = vunpack.c.h.b16 %v585
    %v683 = vunpack.c.l.b16 %v586
    %v684 = vunpack.c.h.b16 %v586
    %v685 = vunpack.c.l.b16 %v587
    %v686 = vunpack.c.h.b16 %v587
    %v687 = vunpack.c.l.b16 %v588
    %v688 = vunpack.c.h.b16 %v588
    %v689 = vunpack.c.l.b16 %v589
    %v690 = vunpack.c.h.b16 %v589
    %v691 = vunpack.c.l.b16 %v590
    %v692 = vunpack.c.h.b16 %v590
    %v693 = vunpack.c.l.b16 %v591
    %v694 = vunpack.c.h.b16 %v591
    %v695 = vpack.c.b16 %v633, %v631
    %v696 = vpack.c.b16 %v634, %v632
    %v697 = vpack.c.b16 %v637, %v635
    %v698 = vpack.c.b16 %v638, %v636
    %v699 = vpack.c.b16 %v641, %v639
    %v700 = vpack.c.b16 %v642, %v640
    %v701 = vpack.c.b16 %v645, %v643
    %v702 = vpack.c.b16 %v646, %v644
    %v703 = vpack.c.b16 %v649, %v647
    %v704 = vpack.c.b16 %v650, %v648
    %v705 = vpack.c.b16 %v653, %v651
    %v706 = vpack.c.b16 %v654, %v652
    %v707 = vpack.c.b16 %v657, %v655
    %v708 = vpack.c.b16 %v658, %v656
    %v709 = vpack.c.b16 %v661, %v659
    %v710 = vpack.c.b16 %v662, %v660
    %v711 = vpack.c.b16 %v665, %v663
    %v712 = vpack.c.b16 %v666, %v664
    %v713 = vpack.c.b16 %v669, %v667
    %v714 = vpack.c.b16 %v670, %v668
    %v715 = vpack.c.b16 %v673, %v671
    %v716 = vpack.c.b16 %v674, %v672
    %v717 = vpack.c.b16 %v677, %v675
    %v718 = vpack.c.b16 %v678, %v676
    %v719 = vpack.c.b16 %v681, %v679
    %v720 = vpack.c.b16 %v682, %v680
    %v721 = vpack.c.b16 %v685, %v683
    %v722 = vpack.c.b16 %v686, %v684
    %v723 = vpack.c.b16 %v689, %v687
    %v724 = vpack.c.b16 %v690, %v688
    %v725 = vpack.c.b16 %v693, %v691
    %v726 = vpack.c.b16 %v694, %v692
    %759 = vmatpush.bf16.msra.mxu0 %v709
    %760 = vmatpush.bf16.msra.mxu0 %v707
    %761 = vmatpush.bf16.msra.mxu0 %v705
    %762 = vmatpush.bf16.msra.mxu0 %v703
    %763 = vmatpush.bf16.msra.mxu0 %v701
    %764 = vmatpush.bf16.msra.mxu0 %v699
    %765 = vmatpush.bf16.msra.mxu0 %v697
    %766 = vmatpush.bf16.msra.mxu0 %v695
    %767 = vmatmul.bf16.gmra.mxu0 %v557
    %v768 = vpop.f32.mrf.mxu0
    %v769 = vadd.f32 %v595, %v768
    %v770 = vpop.f32.mrf.mxu0
    %771 = vdwg.mxu0
    %772 = vmatpush.bf16.msra.mxu0 %v725
    %773 = vmatpush.bf16.msra.mxu0 %v723
    %774 = vmatpush.bf16.msra.mxu0 %v721
    %775 = vmatpush.bf16.msra.mxu0 %v719
    %776 = vmatpush.bf16.msra.mxu0 %v717
    %777 = vmatpush.bf16.msra.mxu0 %v715
    %778 = vmatpush.bf16.msra.mxu0 %v713
    %779 = vmatpush.bf16.msra.mxu0 %v711
    %780 = vmatmul.bf16.gmra.mxu0 %v558
    %v781 = vpop.f32.mrf.mxu0
    %v782 = vadd.f32 %v769, %v781
    %v783 = vpop.f32.mrf.mxu0
    %784 = vdwg.mxu0
    %785 = vmatpush.bf16.msra.mxu0 %v710
    %786 = vmatpush.bf16.msra.mxu0 %v708
    %787 = vmatpush.bf16.msra.mxu0 %v706
    %788 = vmatpush.bf16.msra.mxu0 %v704
    %789 = vmatpush.bf16.msra.mxu0 %v702
    %790 = vmatpush.bf16.msra.mxu0 %v700
    %791 = vmatpush.bf16.msra.mxu0 %v698
    %792 = vmatpush.bf16.msra.mxu0 %v696
    %793 = vmatmul.bf16.gmra.mxu0 %v557
    %v794 = vpop.f32.mrf.mxu0
    %v795 = vadd.f32 %v596, %v794
    %v796 = vpop.f32.mrf.mxu0
    %797 = vdwg.mxu0
    %798 = vmatpush.bf16.msra.mxu0 %v726
    %799 = vmatpush.bf16.msra.mxu0 %v724
    %800 = vmatpush.bf16.msra.mxu0 %v722
    %801 = vmatpush.bf16.msra.mxu0 %v720
    %802 = vmatpush.bf16.msra.mxu0 %v718
    %803 = vmatpush.bf16.msra.mxu0 %v716
    %804 = vmatpush.bf16.msra.mxu0 %v714
    %805 = vmatpush.bf16.msra.mxu0 %v712
    %806 = vmatmul.bf16.gmra.mxu0 %v558
    %v807 = vpop.f32.mrf.mxu0
    %v808 = vadd.f32 %v795, %v807
    %v809 = vpop.f32.mrf.mxu0
    %810 = vdwg.mxu0
    %v811 = vmul.f32 %v782, 0.5
    %v812 = vmul.f32 %v808, 0.5
    %v813 = vtanh.pop %v811
    %v814 = vtanh.pop %v812
    %v815 = vmul.f32 %v813, 0.5
    %v816 = vmul.f32 %v814, 0.5
    %v817 = vadd.f32 %v815, 0.5
    %v818 = vadd.f32 %v816, 0.5
    %v819 = vpack.c.bf16 %v817, %v817
    %v820 = vpack.c.bf16 %v818, %v818
    %s821 = scalar_lea.vmem [#allocation2], 768
    %v822 = vld [vmem:[%s821] sm:$0xff]
    %v823 = vld [vmem:[%s821 + $0x8] sm:$0xff]
    %v824 = vld [vmem:[%s821 + $0x10] sm:$0xff]
    %v825 = vld [vmem:[%s821 + $0x18] sm:$0xff]
    %v826 = vld [vmem:[%s821 + $0x20] sm:$0xff]
    %v827 = vld [vmem:[%s821 + $0x28] sm:$0xff]
    %v828 = vld [vmem:[%s821 + $0x30] sm:$0xff]
    %v829 = vld [vmem:[%s821 + $0x38] sm:$0xff]
    %v830 = vld [vmem:[%s821 + $0x40] sm:$0xff]
    %v831 = vld [vmem:[%s821 + $0x48] sm:$0xff]
    %v832 = vld [vmem:[%s821 + $0x50] sm:$0xff]
    %v833 = vld [vmem:[%s821 + $0x58] sm:$0xff]
    %v834 = vld [vmem:[%s821 + $0x60] sm:$0xff]
    %v835 = vld [vmem:[%s821 + $0x68] sm:$0xff]
    %v836 = vld [vmem:[%s821 + $0x70] sm:$0xff]
    %v837 = vld [vmem:[%s821 + $0x78] sm:$0xff]
    %v838 = vld [vmem:[%s821 + $0x80] sm:$0xff]
    %v839 = vld [vmem:[%s821 + $0x88] sm:$0xff]
    %v840 = vld [vmem:[%s821 + $0x90] sm:$0xff]
    %v841 = vld [vmem:[%s821 + $0x98] sm:$0xff]
    %v842 = vld [vmem:[%s821 + $0xa0] sm:$0xff]
    %v843 = vld [vmem:[%s821 + $0xa8] sm:$0xff]
    %v844 = vld [vmem:[%s821 + $0xb0] sm:$0xff]
    %v845 = vld [vmem:[%s821 + $0xb8] sm:$0xff]
    %v846 = vld [vmem:[%s821 + $0xc0] sm:$0xff]
    %v847 = vld [vmem:[%s821 + $0xc8] sm:$0xff]
    %v848 = vld [vmem:[%s821 + $0xd0] sm:$0xff]
    %v849 = vld [vmem:[%s821 + $0xd8] sm:$0xff]
    %v850 = vld [vmem:[%s821 + $0xe0] sm:$0xff]
    %v851 = vld [vmem:[%s821 + $0xe8] sm:$0xff]
    %v852 = vld [vmem:[%s821 + $0xf0] sm:$0xff]
    %v853 = vld [vmem:[%s821 + $0xf8] sm:$0xff]
    %s854 = scalar_lea.vmem %s2, 3
    %v855 = vld [vmem:[%s854] ss:$8 sm:$0x3]
    %v857 = vperm.slane %v855, 0
    %v858 = vperm.slane %v855, 1
    %v893 = vunpack.c.l.b16 %v822
    %v894 = vunpack.c.h.b16 %v822
    %v895 = vunpack.c.l.b16 %v823
    %v896 = vunpack.c.h.b16 %v823
    %v897 = vunpack.c.l.b16 %v824
    %v898 = vunpack.c.h.b16 %v824
    %v899 = vunpack.c.l.b16 %v825
    %v900 = vunpack.c.h.b16 %v825
    %v901 = vunpack.c.l.b16 %v826
    %v902 = vunpack.c.h.b16 %v826
    %v903 = vunpack.c.l.b16 %v827
    %v904 = vunpack.c.h.b16 %v827
    %v905 = vunpack.c.l.b16 %v828
    %v906 = vunpack.c.h.b16 %v828
    %v907 = vunpack.c.l.b16 %v829
    %v908 = vunpack.c.h.b16 %v829
    %v909 = vunpack.c.l.b16 %v830
    %v910 = vunpack.c.h.b16 %v830
    %v911 = vunpack.c.l.b16 %v831
    %v912 = vunpack.c.h.b16 %v831
    %v913 = vunpack.c.l.b16 %v832
    %v914 = vunpack.c.h.b16 %v832
    %v915 = vunpack.c.l.b16 %v833
    %v916 = vunpack.c.h.b16 %v833
    %v917 = vunpack.c.l.b16 %v834
    %v918 = vunpack.c.h.b16 %v834
    %v919 = vunpack.c.l.b16 %v835
    %v920 = vunpack.c.h.b16 %v835
    %v921 = vunpack.c.l.b16 %v836
    %v922 = vunpack.c.h.b16 %v836
    %v923 = vunpack.c.l.b16 %v837
    %v924 = vunpack.c.h.b16 %v837
    %v925 = vunpack.c.l.b16 %v838
    %v926 = vunpack.c.h.b16 %v838
    %v927 = vunpack.c.l.b16 %v839
    %v928 = vunpack.c.h.b16 %v839
    %v929 = vunpack.c.l.b16 %v840
    %v930 = vunpack.c.h.b16 %v840
    %v931 = vunpack.c.l.b16 %v841
    %v932 = vunpack.c.h.b16 %v841
    %v933 = vunpack.c.l.b16 %v842
    %v934 = vunpack.c.h.b16 %v842
    %v935 = vunpack.c.l.b16 %v843
    %v936 = vunpack.c.h.b16 %v843
    %v937 = vunpack.c.l.b16 %v844
    %v938 = vunpack.c.h.b16 %v844
    %v939 = vunpack.c.l.b16 %v845
    %v940 = vunpack.c.h.b16 %v845
    %v941 = vunpack.c.l.b16 %v846
    %v942 = vunpack.c.h.b16 %v846
    %v943 = vunpack.c.l.b16 %v847
    %v944 = vunpack.c.h.b16 %v847
    %v945 = vunpack.c.l.b16 %v848
    %v946 = vunpack.c.h.b16 %v848
    %v947 = vunpack.c.l.b16 %v849
    %v948 = vunpack.c.h.b16 %v849
    %v949 = vunpack.c.l.b16 %v850
    %v950 = vunpack.c.h.b16 %v850
    %v951 = vunpack.c.l.b16 %v851
    %v952 = vunpack.c.h.b16 %v851
    %v953 = vunpack.c.l.b16 %v852
    %v954 = vunpack.c.h.b16 %v852
    %v955 = vunpack.c.l.b16 %v853
    %v956 = vunpack.c.h.b16 %v853
    %v957 = vpack.c.b16 %v895, %v893
    %v958 = vpack.c.b16 %v896, %v894
    %v959 = vpack.c.b16 %v899, %v897
    %v960 = vpack.c.b16 %v900, %v898
    %v961 = vpack.c.b16 %v903, %v901
    %v962 = vpack.c.b16 %v904, %v902
    %v963 = vpack.c.b16 %v907, %v905
    %v964 = vpack.c.b16 %v908, %v906
    %v965 = vpack.c.b16 %v911, %v909
    %v966 = vpack.c.b16 %v912, %v910
    %v967 = vpack.c.b16 %v915, %v913
    %v968 = vpack.c.b16 %v916, %v914
    %v969 = vpack.c.b16 %v919, %v917
    %v970 = vpack.c.b16 %v920, %v918
    %v971 = vpack.c.b16 %v923, %v921
    %v972 = vpack.c.b16 %v924, %v922
    %v973 = vpack.c.b16 %v927, %v925
    %v974 = vpack.c.b16 %v928, %v926
    %v975 = vpack.c.b16 %v931, %v929
    %v976 = vpack.c.b16 %v932, %v930
    %v977 = vpack.c.b16 %v935, %v933
    %v978 = vpack.c.b16 %v936, %v934
    %v979 = vpack.c.b16 %v939, %v937
    %v980 = vpack.c.b16 %v940, %v938
    %v981 = vpack.c.b16 %v943, %v941
    %v982 = vpack.c.b16 %v944, %v942
    %v983 = vpack.c.b16 %v947, %v945
    %v984 = vpack.c.b16 %v948, %v946
    %v985 = vpack.c.b16 %v951, %v949
    %v986 = vpack.c.b16 %v952, %v950
    %v987 = vpack.c.b16 %v955, %v953
    %v988 = vpack.c.b16 %v956, %v954
    %1021 = vmatpush.bf16.msra.mxu0 %v971
    %1022 = vmatpush.bf16.msra.mxu0 %v969
    %1023 = vmatpush.bf16.msra.mxu0 %v967
    %1024 = vmatpush.bf16.msra.mxu0 %v965
    %1025 = vmatpush.bf16.msra.mxu0 %v963
    %1026 = vmatpush.bf16.msra.mxu0 %v961
    %1027 = vmatpush.bf16.msra.mxu0 %v959
    %1028 = vmatpush.bf16.msra.mxu0 %v957
    %1029 = vmatmul.bf16.gmra.mxu0 %v819
    %v1030 = vpop.f32.mrf.mxu0
    %v1031 = vadd.f32 %v857, %v1030
    %v1032 = vpop.f32.mrf.mxu0
    %1033 = vdwg.mxu0
    %1034 = vmatpush.bf16.msra.mxu0 %v987
    %1035 = vmatpush.bf16.msra.mxu0 %v985
    %1036 = vmatpush.bf16.msra.mxu0 %v983
    %1037 = vmatpush.bf16.msra.mxu0 %v981
    %1038 = vmatpush.bf16.msra.mxu0 %v979
    %1039 = vmatpush.bf16.msra.mxu0 %v977
    %1040 = vmatpush.bf16.msra.mxu0 %v975
    %1041 = vmatpush.bf16.msra.mxu0 %v973
    %1042 = vmatmul.bf16.gmra.mxu0 %v820
    %v1043 = vpop.f32.mrf.mxu0
    %v1044 = vadd.f32 %v1031, %v1043
    %v1045 = vpop.f32.mrf.mxu0
    %1046 = vdwg.mxu0
    %1047 = vmatpush.bf16.msra.mxu0 %v972
    %1048 = vmatpush.bf16.msra.mxu0 %v970
    %1049 = vmatpush.bf16.msra.mxu0 %v968
    %1050 = vmatpush.bf16.msra.mxu0 %v966
    %1051 = vmatpush.bf16.msra.mxu0 %v964
    %1052 = vmatpush.bf16.msra.mxu0 %v962
    %1053 = vmatpush.bf16.msra.mxu0 %v960
    %1054 = vmatpush.bf16.msra.mxu0 %v958
    %1055 = vmatmul.bf16.gmra.mxu0 %v819
    %v1056 = vpop.f32.mrf.mxu0
    %v1057 = vadd.f32 %v858, %v1056
    %v1058 = vpop.f32.mrf.mxu0
    %1059 = vdwg.mxu0
    %1060 = vmatpush.bf16.msra.mxu0 %v988
    %1061 = vmatpush.bf16.msra.mxu0 %v986
    %1062 = vmatpush.bf16.msra.mxu0 %v984
    %1063 = vmatpush.bf16.msra.mxu0 %v982
    %1064 = vmatpush.bf16.msra.mxu0 %v980
    %1065 = vmatpush.bf16.msra.mxu0 %v978
    %1066 = vmatpush.bf16.msra.mxu0 %v976
    %1067 = vmatpush.bf16.msra.mxu0 %v974
    %1068 = vmatmul.bf16.gmra.mxu0 %v820
    %v1069 = vpop.f32.mrf.mxu0
    %v1070 = vadd.f32 %v1057, %v1069
    %v1071 = vpop.f32.mrf.mxu0
    %1072 = vdwg.mxu0
    %v1073 = vmul.f32 %v1044, 0.5
    %v1074 = vmul.f32 %v1070, 0.5
    %v1075 = vtanh.pop %v1073
    %v1076 = vtanh.pop %v1074
    %v1077 = vmul.f32 %v1075, 0.5
    %v1078 = vmul.f32 %v1076, 0.5
    %v1079 = vadd.f32 %v1077, 0.5
    %v1080 = vadd.f32 %v1078, 0.5
    %v1081 = vpack.c.bf16 %v1079, %v1079
    %v1082 = vpack.c.bf16 %v1080, %v1080
    %s1083 = scalar_lea.vmem [#allocation2], 1024
    %v1084 = vld [vmem:[%s1083] sm:$0xff]
    %v1085 = vld [vmem:[%s1083 + $0x8] sm:$0xff]
    %v1086 = vld [vmem:[%s1083 + $0x10] sm:$0xff]
    %v1087 = vld [vmem:[%s1083 + $0x18] sm:$0xff]
    %v1088 = vld [vmem:[%s1083 + $0x20] sm:$0xff]
    %v1089 = vld [vmem:[%s1083 + $0x28] sm:$0xff]
    %v1090 = vld [vmem:[%s1083 + $0x30] sm:$0xff]
    %v1091 = vld [vmem:[%s1083 + $0x38] sm:$0xff]
    %v1092 = vld [vmem:[%s1083 + $0x40] sm:$0xff]
    %v1093 = vld [vmem:[%s1083 + $0x48] sm:$0xff]
    %v1094 = vld [vmem:[%s1083 + $0x50] sm:$0xff]
    %v1095 = vld [vmem:[%s1083 + $0x58] sm:$0xff]
    %v1096 = vld [vmem:[%s1083 + $0x60] sm:$0xff]
    %v1097 = vld [vmem:[%s1083 + $0x68] sm:$0xff]
    %v1098 = vld [vmem:[%s1083 + $0x70] sm:$0xff]
    %v1099 = vld [vmem:[%s1083 + $0x78] sm:$0xff]
    %v1100 = vld [vmem:[%s1083 + $0x80] sm:$0xff]
    %v1101 = vld [vmem:[%s1083 + $0x88] sm:$0xff]
    %v1102 = vld [vmem:[%s1083 + $0x90] sm:$0xff]
    %v1103 = vld [vmem:[%s1083 + $0x98] sm:$0xff]
    %v1104 = vld [vmem:[%s1083 + $0xa0] sm:$0xff]
    %v1105 = vld [vmem:[%s1083 + $0xa8] sm:$0xff]
    %v1106 = vld [vmem:[%s1083 + $0xb0] sm:$0xff]
    %v1107 = vld [vmem:[%s1083 + $0xb8] sm:$0xff]
    %v1108 = vld [vmem:[%s1083 + $0xc0] sm:$0xff]
    %v1109 = vld [vmem:[%s1083 + $0xc8] sm:$0xff]
    %v1110 = vld [vmem:[%s1083 + $0xd0] sm:$0xff]
    %v1111 = vld [vmem:[%s1083 + $0xd8] sm:$0xff]
    %v1112 = vld [vmem:[%s1083 + $0xe0] sm:$0xff]
    %v1113 = vld [vmem:[%s1083 + $0xe8] sm:$0xff]
    %v1114 = vld [vmem:[%s1083 + $0xf0] sm:$0xff]
    %v1115 = vld [vmem:[%s1083 + $0xf8] sm:$0xff]
    %s1116 = scalar_lea.vmem %s2, 4
    %v1117 = vld [vmem:[%s1116] ss:$8 sm:$0x3]
    %v1119 = vperm.slane %v1117, 0
    %v1120 = vperm.slane %v1117, 1
    %v1155 = vunpack.c.l.b16 %v1084
    %v1156 = vunpack.c.h.b16 %v1084
    %v1157 = vunpack.c.l.b16 %v1085
    %v1158 = vunpack.c.h.b16 %v1085
    %v1159 = vunpack.c.l.b16 %v1086
    %v1160 = vunpack.c.h.b16 %v1086
    %v1161 = vunpack.c.l.b16 %v1087
    %v1162 = vunpack.c.h.b16 %v1087
    %v1163 = vunpack.c.l.b16 %v1088
    %v1164 = vunpack.c.h.b16 %v1088
    %v1165 = vunpack.c.l.b16 %v1089
    %v1166 = vunpack.c.h.b16 %v1089
    %v1167 = vunpack.c.l.b16 %v1090
    %v1168 = vunpack.c.h.b16 %v1090
    %v1169 = vunpack.c.l.b16 %v1091
    %v1170 = vunpack.c.h.b16 %v1091
    %v1171 = vunpack.c.l.b16 %v1092
    %v1172 = vunpack.c.h.b16 %v1092
    %v1173 = vunpack.c.l.b16 %v1093
    %v1174 = vunpack.c.h.b16 %v1093
    %v1175 = vunpack.c.l.b16 %v1094
    %v1176 = vunpack.c.h.b16 %v1094
    %v1177 = vunpack.c.l.b16 %v1095
    %v1178 = vunpack.c.h.b16 %v1095
    %v1179 = vunpack.c.l.b16 %v1096
    %v1180 = vunpack.c.h.b16 %v1096
    %v1181 = vunpack.c.l.b16 %v1097
    %v1182 = vunpack.c.h.b16 %v1097
    %v1183 = vunpack.c.l.b16 %v1098
    %v1184 = vunpack.c.h.b16 %v1098
    %v1185 = vunpack.c.l.b16 %v1099
    %v1186 = vunpack.c.h.b16 %v1099
    %v1187 = vunpack.c.l.b16 %v1100
    %v1188 = vunpack.c.h.b16 %v1100
    %v1189 = vunpack.c.l.b16 %v1101
    %v1190 = vunpack.c.h.b16 %v1101
    %v1191 = vunpack.c.l.b16 %v1102
    %v1192 = vunpack.c.h.b16 %v1102
    %v1193 = vunpack.c.l.b16 %v1103
    %v1194 = vunpack.c.h.b16 %v1103
    %v1195 = vunpack.c.l.b16 %v1104
    %v1196 = vunpack.c.h.b16 %v1104
    %v1197 = vunpack.c.l.b16 %v1105
    %v1198 = vunpack.c.h.b16 %v1105
    %v1199 = vunpack.c.l.b16 %v1106
    %v1200 = vunpack.c.h.b16 %v1106
    %v1201 = vunpack.c.l.b16 %v1107
    %v1202 = vunpack.c.h.b16 %v1107
    %v1203 = vunpack.c.l.b16 %v1108
    %v1204 = vunpack.c.h.b16 %v1108
    %v1205 = vunpack.c.l.b16 %v1109
    %v1206 = vunpack.c.h.b16 %v1109
    %v1207 = vunpack.c.l.b16 %v1110
    %v1208 = vunpack.c.h.b16 %v1110
    %v1209 = vunpack.c.l.b16 %v1111
    %v1210 = vunpack.c.h.b16 %v1111
    %v1211 = vunpack.c.l.b16 %v1112
    %v1212 = vunpack.c.h.b16 %v1112
    %v1213 = vunpack.c.l.b16 %v1113
    %v1214 = vunpack.c.h.b16 %v1113
    %v1215 = vunpack.c.l.b16 %v1114
    %v1216 = vunpack.c.h.b16 %v1114
    %v1217 = vunpack.c.l.b16 %v1115
    %v1218 = vunpack.c.h.b16 %v1115
    %v1219 = vpack.c.b16 %v1157, %v1155
    %v1220 = vpack.c.b16 %v1158, %v1156
    %v1221 = vpack.c.b16 %v1161, %v1159
    %v1222 = vpack.c.b16 %v1162, %v1160
    %v1223 = vpack.c.b16 %v1165, %v1163
    %v1224 = vpack.c.b16 %v1166, %v1164
    %v1225 = vpack.c.b16 %v1169, %v1167
    %v1226 = vpack.c.b16 %v1170, %v1168
    %v1227 = vpack.c.b16 %v1173, %v1171
    %v1228 = vpack.c.b16 %v1174, %v1172
    %v1229 = vpack.c.b16 %v1177, %v1175
    %v1230 = vpack.c.b16 %v1178, %v1176
    %v1231 = vpack.c.b16 %v1181, %v1179
    %v1232 = vpack.c.b16 %v1182, %v1180
    %v1233 = vpack.c.b16 %v1185, %v1183
    %v1234 = vpack.c.b16 %v1186, %v1184
    %v1235 = vpack.c.b16 %v1189, %v1187
    %v1236 = vpack.c.b16 %v1190, %v1188
    %v1237 = vpack.c.b16 %v1193, %v1191
    %v1238 = vpack.c.b16 %v1194, %v1192
    %v1239 = vpack.c.b16 %v1197, %v1195
    %v1240 = vpack.c.b16 %v1198, %v1196
    %v1241 = vpack.c.b16 %v1201, %v1199
    %v1242 = vpack.c.b16 %v1202, %v1200
    %v1243 = vpack.c.b16 %v1205, %v1203
    %v1244 = vpack.c.b16 %v1206, %v1204
    %v1245 = vpack.c.b16 %v1209, %v1207
    %v1246 = vpack.c.b16 %v1210, %v1208
    %v1247 = vpack.c.b16 %v1213, %v1211
    %v1248 = vpack.c.b16 %v1214, %v1212
    %v1249 = vpack.c.b16 %v1217, %v1215
    %v1250 = vpack.c.b16 %v1218, %v1216
    %1283 = vmatpush.bf16.msra.mxu0 %v1233
    %1284 = vmatpush.bf16.msra.mxu0 %v1231
    %1285 = vmatpush.bf16.msra.mxu0 %v1229
    %1286 = vmatpush.bf16.msra.mxu0 %v1227
    %1287 = vmatpush.bf16.msra.mxu0 %v1225
    %1288 = vmatpush.bf16.msra.mxu0 %v1223
    %1289 = vmatpush.bf16.msra.mxu0 %v1221
    %1290 = vmatpush.bf16.msra.mxu0 %v1219
    %1291 = vmatmul.bf16.gmra.mxu0 %v1081
    %v1292 = vpop.f32.mrf.mxu0
    %v1293 = vadd.f32 %v1119, %v1292
    %v1294 = vpop.f32.mrf.mxu0
    %1295 = vdwg.mxu0
    %1296 = vmatpush.bf16.msra.mxu0 %v1249
    %1297 = vmatpush.bf16.msra.mxu0 %v1247
    %1298 = vmatpush.bf16.msra.mxu0 %v1245
    %1299 = vmatpush.bf16.msra.mxu0 %v1243
    %1300 = vmatpush.bf16.msra.mxu0 %v1241
    %1301 = vmatpush.bf16.msra.mxu0 %v1239
    %1302 = vmatpush.bf16.msra.mxu0 %v1237
    %1303 = vmatpush.bf16.msra.mxu0 %v1235
    %1304 = vmatmul.bf16.gmra.mxu0 %v1082
    %v1305 = vpop.f32.mrf.mxu0
    %v1306 = vadd.f32 %v1293, %v1305
    %v1307 = vpop.f32.mrf.mxu0
    %1308 = vdwg.mxu0
    %1309 = vmatpush.bf16.msra.mxu0 %v1234
    %1310 = vmatpush.bf16.msra.mxu0 %v1232
    %1311 = vmatpush.bf16.msra.mxu0 %v1230
    %1312 = vmatpush.bf16.msra.mxu0 %v1228
    %1313 = vmatpush.bf16.msra.mxu0 %v1226
    %1314 = vmatpush.bf16.msra.mxu0 %v1224
    %1315 = vmatpush.bf16.msra.mxu0 %v1222
    %1316 = vmatpush.bf16.msra.mxu0 %v1220
    %1317 = vmatmul.bf16.gmra.mxu0 %v1081
    %v1318 = vpop.f32.mrf.mxu0
    %v1319 = vadd.f32 %v1120, %v1318
    %v1320 = vpop.f32.mrf.mxu0
    %1321 = vdwg.mxu0
    %1322 = vmatpush.bf16.msra.mxu0 %v1250
    %1323 = vmatpush.bf16.msra.mxu0 %v1248
    %1324 = vmatpush.bf16.msra.mxu0 %v1246
    %1325 = vmatpush.bf16.msra.mxu0 %v1244
    %1326 = vmatpush.bf16.msra.mxu0 %v1242
    %1327 = vmatpush.bf16.msra.mxu0 %v1240
    %1328 = vmatpush.bf16.msra.mxu0 %v1238
    %1329 = vmatpush.bf16.msra.mxu0 %v1236
    %1330 = vmatmul.bf16.gmra.mxu0 %v1082
    %v1331 = vpop.f32.mrf.mxu0
    %v1332 = vadd.f32 %v1319, %v1331
    %v1333 = vpop.f32.mrf.mxu0
    %1334 = vdwg.mxu0
    %v1335 = vmul.f32 %v1306, 0.5
    %v1336 = vmul.f32 %v1332, 0.5
    %v1337 = vtanh.pop %v1335
    %v1338 = vtanh.pop %v1336
    %v1339 = vmul.f32 %v1337, 0.5
    %v1340 = vmul.f32 %v1338, 0.5
    %v1341 = vadd.f32 %v1339, 0.5
    %v1342 = vadd.f32 %v1340, 0.5
    %s1343 = scalar_lea.vmem %s2, 5
    %v1344 = vld [vmem:[%s1343] ss:$8 sm:$0x3]
    %v1345 = vld [vmem:[%s2 + $0x6] ss:$0 sm:$0xff]
    %v1347 = vperm.slane %v1344, 0
    %v1348 = vperm.slane %v1344, 1
    %v1351 = vmul.f32 %v1341, %v1347
    %v1352 = vmul.f32 %v1342, %v1348
    %vm1353 = vcmask 1041408
    %v1354 = vsel %vm1353, %v1351, 0.0
    %v1355 = vsel %vm1353, %v1352, 0.0
    %v1356 = vadd.f32 %v1354, %v1355
    %1357 = vadd.xlane.f32.xlu0 %v1356
    %v1358 = vpop.xlane.xlu0 %1357
    %v1359 = vadd.f32 %v1358, %v1345
    %v1360 = vmul.f32 %v1359, 0.5
    %v1361 = vtanh.pop %v1360
    %v1362 = vmul.f32 %v1361, 0.5
    %v1363 = vadd.f32 %v1362, 0.5
    %vm1364 = vcmask 1024
    %1365 = vst.msk [vmem:[%s3] sm:$0x3] %vm1364, %v1363
    // Predicated region
    $region18: #{low_grade_discriminator.1} parent=1 // pred_check
      _
    $region19: #{low_grade_discriminator.1} parent=1 // pred_check_branch
      %1367 = sbr.rel (0) target = $region21
    $region20: #{low_grade_discriminator.1} parent=1 // pred_region
      _
    $region21: #{low_grade_discriminator.1} parent=1 // pred_fallthru
      _
    // Predicated region
    $region22: #{low_grade_discriminator.1} parent=1 // pred_check
      _
    $region23: #{low_grade_discriminator.1} parent=1 // pred_check_branch
      %1369 = sbr.rel (0) target = $region25
    $region24: #{low_grade_discriminator.1} parent=1 // pred_region
      _
    $region25: #{low_grade_discriminator.1} parent=1 // pred_fallthru
      _
    %1370 = vsyncpa [#allocation3], 1

</llo_original>
